<compile_context>
chip_gen: v5e
topology: v5e:2x2
jax: 0.10.0
libtpu: 0.0.40
codegen_flags: <defaults>
</compile_context>

<pallas_src>
import functools

import jax
import jax.numpy as jnp
from jax.experimental import pallas as pl
from jax.experimental.pallas import tpu as pltpu

LANES = 128
SUBLANES = 8
ALIGN = SUBLANES * LANES          # 1024 elements: guarantees rows % 8 == 0
TILE_ROWS = 8192                  # 4 MiB per f32 input block
MIN_BLOCKS = 8                    # keep both v7x TCs + the pipeline busy


def _block_sum(x32):
    """(tile_rows, 128) f32 -> (8, 128) partial sum.

    Uses a few independent add chains of whole (8,128) vregs (pure VPU adds,
    no cross-lane/sublane movement, no layout changes: all slices/reshapes are
    sublane-aligned relabelings of the leading dim).
    """
    rows_blk = x32.shape[0]
    n0 = rows_blk // SUBLANES
    chains = 8
    while n0 % chains:
        chains //= 2
    step = (n0 // chains) * SUBLANES
    parts = [
        x32[c * step:(c + 1) * step].reshape(-1, SUBLANES, LANES).sum(axis=0)
        for c in range(chains)
    ]
    acc = parts[0]
    for part in parts[1:]:
        acc = acc + part
    return acc


def _masked_l1_kernel(pred_ref, targ_ref, mask_ref, num_ref, den_ref, *,
                      rows, tile_rows):
    # Upcast in-kernel (VPU work hidden under DMA; required for v5e anyway).
    p = pred_ref[...].astype(jnp.float32)
    t = targ_ref[...].astype(jnp.float32)

    valid = mask_ref[...] != 0

    # Ragged last block: rows past the real array hold unspecified data.
    # Static check: this branch is only emitted when a ragged block exists,
    # and uses a (tile_rows, 1) column predicate broadcast over lanes.
    if rows % tile_rows != 0:
        row_ids = jax.lax.broadcasted_iota(jnp.int32, (tile_rows, 1), 0)
        inb = (row_ids + pl.program_id(0) * tile_rows) < rows
        valid = jnp.logical_and(valid, inb)

    # where (not multiply): NaN/Inf at invalid positions must not leak in.
    absdiff = jnp.where(valid, jnp.abs(t - p), 0.0)
    ones = valid.astype(jnp.float32)

    # Each grid step writes its own private (8,128) partials -> "parallel" grid.
    num_ref[...] = _block_sum(absdiff)
    den_ref[...] = _block_sum(ones)


def _choose_tile_rows(rows):
    """rows is a multiple of 8; pick tile rows (multiple of 8)."""
    tile = min(TILE_ROWS, rows)
    if rows >= MIN_BLOCKS * SUBLANES:
        # Keep at least ~MIN_BLOCKS blocks before growing the tile.
        cap = -(-rows // MIN_BLOCKS)
        cap = -(-cap // SUBLANES) * SUBLANES
        tile = min(tile, cap)
    return max(tile, SUBLANES)


@jax.jit
def masked_l1_loss(pred, target, valid_mask):
    assert pred.ndim == target.ndim, "inconsistent dimensions"
    assert pred.shape == target.shape == valid_mask.shape, "inconsistent dimensions"

    p = pred.reshape(-1)
    t = target.reshape(-1)
    m = valid_mask.reshape(-1)
    # Stream the mask as 1 byte/elem. Skip the cast if it is already an
    # 8-bit integer type (for bool we keep one cast for lowering safety).
    if not (jnp.issubdtype(m.dtype, jnp.integer) and m.dtype.itemsize == 1):
        m = (m != 0).astype(jnp.int8)

    n = p.shape[0]
    n_main = (n // ALIGN) * ALIGN   # 1024-aligned prefix handled by the kernel

    num = jnp.float32(0.0)
    den = jnp.float32(0.0)

    if n_main:
        rows = n_main // LANES
        tile_rows = _choose_tile_rows(rows)
        num_blocks = -(-rows // tile_rows)

        p2 = p[:n_main].reshape(rows, LANES)
        t2 = t[:n_main].reshape(rows, LANES)
        m2 = m[:n_main].reshape(rows, LANES)

        kernel = functools.partial(_masked_l1_kernel, rows=rows,
                                   tile_rows=tile_rows)

        in_spec = pl.BlockSpec((tile_rows, LANES), lambda i: (i, 0))
        out_spec = pl.BlockSpec((SUBLANES, LANES), lambda i: (i, 0))
        out_shape = jax.ShapeDtypeStruct((num_blocks * SUBLANES, LANES),
                                         jnp.float32)

        bytes_accessed = (
            n_main * (p2.dtype.itemsize + t2.dtype.itemsize + m2.dtype.itemsize)
            + 2 * num_blocks * SUBLANES * LANES * 4)

        num_p, den_p = pl.pallas_call(
            kernel,
            out_shape=(out_shape, out_shape),
            grid_spec=pltpu.PrefetchScalarGridSpec(
                num_scalar_prefetch=0,
                grid=(num_blocks,),
                in_specs=[in_spec, in_spec, in_spec],
                out_specs=(out_spec, out_spec),
            ),
            compiler_params=pltpu.CompilerParams(
                dimension_semantics=("parallel",),
                # 8192-row f32 tiles double-buffered are ~18 MiB; raise the
                # scoped-VMEM limit (v5e default is 16 MiB). Safe everywhere.
                vmem_limit_bytes=32 * 1024 * 1024,
            ),
            cost_estimate=pl.CostEstimate(
                flops=5 * n_main,
                transcendentals=0,
                bytes_accessed=bytes_accessed,
            ),
        )(p2, t2, m2)

        num = num + jnp.sum(num_p, dtype=jnp.float32)
        den = den + jnp.sum(den_p, dtype=jnp.float32)

    if n_main != n:
        # <=1023-element unaligned tail: plain jnp (avoids full-array pads).
        pt = p[n_main:].astype(jnp.float32)
        tt = t[n_main:].astype(jnp.float32)
        mt = m[n_main:] != 0
        num = num + jnp.sum(jnp.where(mt, jnp.abs(tt - pt), 0.0))
        den = den + jnp.sum(mt.astype(jnp.float32))

    # mean over selected elements (NaN if nothing is valid, like PyTorch).
    return (num / den).astype(pred.dtype)


def _reference(pred, target, valid_mask):
    m = valid_mask
    diff = jnp.where(m, jnp.abs(target - pred), 0.0)
    return jnp.sum(diff) / jnp.sum(m.astype(jnp.float32))


if __name__ == "__main__":
    key = jax.random.PRNGKey(0)
    k1, k2, k3 = jax.random.split(key, 3)

    # NCHW inputs, small shapes
    shape = (2, 4, 16, 16)
    pred = jax.random.normal(k1, shape, dtype=jnp.float32)
    target = jax.random.normal(k2, shape, dtype=jnp.float32)
    valid_mask = jax.random.bernoulli(k3, p=0.7, shape=shape)

    loss = masked_l1_loss(pred, target, valid_mask)
    jax.block_until_ready(loss)

    ref = _reference(pred, target, valid_mask)
    assert jnp.allclose(loss, ref, rtol=1e-5, atol=1e-6), (loss, ref)

    print("KERNEL_OK")
</pallas_src>

<mosaic_0001>
module attributes {stable_mosaic.version = 11 : i64} {
  func.func @_masked_l1_kernel(%arg0: i32, %arg1: memref<16x128xf32, #tpu.memory_space<vmem>>, %arg2: memref<16x128xf32, #tpu.memory_space<vmem>>, %arg3: memref<16x128xi8, #tpu.memory_space<vmem>>, %arg4: memref<8x128xf32, #tpu.memory_space<vmem>>, %arg5: memref<8x128xf32, #tpu.memory_space<vmem>>) attributes {dimension_semantics = [#tpu.dimension_semantics<parallel>], iteration_bounds = array<i64: 1>, scalar_prefetch = 0 : i64, scratch_operands = 0 : i64, tpu.core_type = #tpu.core_type<tc>, window_params = [{transform_indices = @transform_0, window_bounds = array<i64: 16, 128>}, {transform_indices = @transform_1, window_bounds = array<i64: 16, 128>}, {transform_indices = @transform_2, window_bounds = array<i64: 16, 128>}, {transform_indices = @transform_3, window_bounds = array<i64: 8, 128>}, {transform_indices = @transform_4, window_bounds = array<i64: 8, 128>}]} {
    %c0 = arith.constant 0 : index
    %c0_0 = arith.constant 0 : index
    %0 = vector.load %arg1[%c0, %c0_0] : memref<16x128xf32, #tpu.memory_space<vmem>>, vector<16x128xf32>
    %c0_1 = arith.constant 0 : index
    %c0_2 = arith.constant 0 : index
    %1 = vector.load %arg2[%c0_1, %c0_2] : memref<16x128xf32, #tpu.memory_space<vmem>>, vector<16x128xf32>
    %c0_3 = arith.constant 0 : index
    %c0_4 = arith.constant 0 : index
    %2 = vector.load %arg3[%c0_3, %c0_4] : memref<16x128xi8, #tpu.memory_space<vmem>>, vector<16x128xi8>
    %c0_i8 = arith.constant 0 : i8
    %3 = vector.broadcast %c0_i8 : i8 to vector<16x128xi8>
    %4 = arith.cmpi ne, %2, %3 : vector<16x128xi8>
    %5 = arith.subf %1, %0 : vector<16x128xf32>
    %6 = math.absf %5 : vector<16x128xf32>
    %cst = arith.constant 0.000000e+00 : f32
    %7 = vector.broadcast %cst : f32 to vector<16x128xf32>
    %8 = arith.select %4, %6, %7 : vector<16x128xi1>, vector<16x128xf32>
    %9 = arith.extui %4 : vector<16x128xi1> to vector<16x128xi32>
    %10 = arith.sitofp %9 : vector<16x128xi32> to vector<16x128xf32>
    %11 = vector.extract_strided_slice %8 {offsets = [0, 0], sizes = [8, 128], strides = [1, 1]} : vector<16x128xf32> to vector<8x128xf32>
    %12 = vector.shape_cast %11 : vector<8x128xf32> to vector<1x8x128xf32>
    %cst_5 = arith.constant dense<0.000000e+00> : vector<8x128xf32>
    %13 = vector.multi_reduction <add>, %12, %cst_5 [0] : vector<1x8x128xf32> to vector<8x128xf32>
    %14 = vector.extract_strided_slice %8 {offsets = [8, 0], sizes = [8, 128], strides = [1, 1]} : vector<16x128xf32> to vector<8x128xf32>
    %15 = vector.shape_cast %14 : vector<8x128xf32> to vector<1x8x128xf32>
    %cst_6 = arith.constant dense<0.000000e+00> : vector<8x128xf32>
    %16 = vector.multi_reduction <add>, %15, %cst_6 [0] : vector<1x8x128xf32> to vector<8x128xf32>
    %17 = arith.addf %13, %16 : vector<8x128xf32>
    %c0_7 = arith.constant 0 : index
    %c0_8 = arith.constant 0 : index
    %18 = vector.load %arg4[%c0_7, %c0_8] : memref<8x128xf32, #tpu.memory_space<vmem>>, vector<8x128xf32>
    tpu.vector_store %arg4[%c0_7, %c0_8], %17 {strides = array<i32>} : memref<8x128xf32, #tpu.memory_space<vmem>>, vector<8x128xf32>,
    %19 = vector.extract_strided_slice %10 {offsets = [0, 0], sizes = [8, 128], strides = [1, 1]} : vector<16x128xf32> to vector<8x128xf32>
    %20 = vector.shape_cast %19 : vector<8x128xf32> to vector<1x8x128xf32>
    %cst_9 = arith.constant dense<0.000000e+00> : vector<8x128xf32>
    %21 = vector.multi_reduction <add>, %20, %cst_9 [0] : vector<1x8x128xf32> to vector<8x128xf32>
    %22 = vector.extract_strided_slice %10 {offsets = [8, 0], sizes = [8, 128], strides = [1, 1]} : vector<16x128xf32> to vector<8x128xf32>
    %23 = vector.shape_cast %22 : vector<8x128xf32> to vector<1x8x128xf32>
    %cst_10 = arith.constant dense<0.000000e+00> : vector<8x128xf32>
    %24 = vector.multi_reduction <add>, %23, %cst_10 [0] : vector<1x8x128xf32> to vector<8x128xf32>
    %25 = arith.addf %21, %24 : vector<8x128xf32>
    %c0_11 = arith.constant 0 : index
    %c0_12 = arith.constant 0 : index
    %26 = vector.load %arg5[%c0_11, %c0_12] : memref<8x128xf32, #tpu.memory_space<vmem>>, vector<8x128xf32>
    tpu.vector_store %arg5[%c0_11, %c0_12], %25 {strides = array<i32>} : memref<8x128xf32, #tpu.memory_space<vmem>>, vector<8x128xf32>,
    return
  }
  func.func @transform_0(%arg0: i32) -> (i32, i32) {
    %c0_i32 = arith.constant 0 : i32
    %c0_i32_0 = arith.constant 0 : i32
    return %arg0, %c0_i32 : i32, i32
  }
  func.func @transform_1(%arg0: i32) -> (i32, i32) {
    %c0_i32 = arith.constant 0 : i32
    %c0_i32_0 = arith.constant 0 : i32
    return %arg0, %c0_i32 : i32, i32
  }
  func.func @transform_2(%arg0: i32) -> (i32, i32) {
    %c0_i32 = arith.constant 0 : i32
    %c0_i32_0 = arith.constant 0 : i32
    return %arg0, %c0_i32 : i32, i32
  }
  func.func @transform_3(%arg0: i32) -> (i32, i32) {
    %c0_i32 = arith.constant 0 : i32
    %c0_i32_0 = arith.constant 0 : i32
    return %arg0, %c0_i32 : i32, i32
  }
  func.func @transform_4(%arg0: i32) -> (i32, i32) {
    %c0_i32 = arith.constant 0 : i32
    %c0_i32_0 = arith.constant 0 : i32
    return %arg0, %c0_i32 : i32, i32
  }
}

</mosaic_0001>

<llo_original>
// kernel: masked_l1_loss.1
$region0: #{masked_l1_loss.1}
  #allocation0 [shape = 'u32[]', space=smem, size = 0x4, offset = 0x4, fixed_abs, tag = 'smem constant byte address 0x4 - core index']
  #allocation1 [shape = 'u32[72,128]{1,0:T(1,128)}', space=vmem, size = 0x9000, scoped, tag = 'internal scratch']
  %s0 = inlined_call_operand.vmem [shape: f32[16,128], index: 0, kind: input, shape index: {}]
  %s1 = inlined_call_operand.vmem [shape: f32[16,128], index: 1, kind: input, shape index: {}]
  %s2 = inlined_call_operand.vmem [shape: s8[16,128], index: 2, kind: input, shape index: {}]
  %s3 = inlined_call_operand.vmem [shape: f32[8,128], index: 3, kind: output, shape index: {0}]
  %s4 = inlined_call_operand.vmem [shape: f32[8,128], index: 4, kind: output, shape index: {1}]
  %5 = xla_tuple %s3, %s4
  %s6 = sld [smem:[#allocation0]]
  $region30: #{masked_l1_loss.1} parent=0
    _
  %s8 = ssub.s32 1, %s6
  %s9 = scalar_select 0, %s8, %s6
  // Predicated region
  $region2: #{masked_l1_loss.1} parent=0 // pred_check
    _
  $region3: #{masked_l1_loss.1} parent=0 // pred_check_branch
    %11 = sbr.rel (0) target = $region5
  $region4: #{masked_l1_loss.1} parent=0 // pred_region
    _
  $region5: #{masked_l1_loss.1} parent=0 // pred_fallthru
    _
  // Predicated region
  $region6: #{masked_l1_loss.1} parent=0 // pred_check
    _
  $region7: #{masked_l1_loss.1} parent=0 // pred_check_branch
    %13 = sbr.rel (0) target = $region9
  $region8: #{masked_l1_loss.1} parent=0 // pred_region
    _
  $region9: #{masked_l1_loss.1} parent=0 // pred_fallthru
    _
  // Predicated region
  $region10: #{masked_l1_loss.1} parent=0 // pred_check
    _
  $region11: #{masked_l1_loss.1} parent=0 // pred_check_branch
    %15 = sbr.rel (0) target = $region13
  $region12: #{masked_l1_loss.1} parent=0 // pred_region
    _
  $region13: #{masked_l1_loss.1} parent=0 // pred_fallthru
    _
  %v18 = vld [vmem:[%s0] sm:$0xff]
  %v19 = vld [vmem:[%s0 + $0x8] sm:$0xff]
  %v20 = vld [vmem:[%s1] sm:$0xff]
  %v21 = vld [vmem:[%s1 + $0x8] sm:$0xff]
  %v22 = vld [vmem:[%s2] sm:$0x3]
  %v23 = vld [vmem:[%s2 + $0x2] sm:$0x3]
  %vm24 = vnez %v22
  %vm25 = vnez %v23
  %v26 = vsub.f32 %v20, %v18
  %v27 = vsub.f32 %v21, %v19
  %v28 = vand.u32 2147483647, %v26
  %v29 = vand.u32 2147483647, %v27
  %v30 = vsel %vm24, 16843009, 0
  %v31 = vsel %vm25, 16843009, 0
  %v32 = vunpack.c.0.s8 %v30
  %v33 = vunpack.c.0.s8 %v31
  %vm34 = vcmp.ne.s32.totalorder %v32, 0
  %vm35 = vcmp.ne.s32.totalorder %v33, 0
  %v36 = vsel %vm34, %v28, 0.0
  %v37 = vsel %vm35, %v29, 0.0
  %v38 = vsel %vm34, 1, 0
  %v39 = vsel %vm35, 1, 0
  %v40 = vcvt.s32.f32 %v38
  %v41 = vcvt.s32.f32 %v39
  %v42 = vadd.f32 %v36, 0.0
  %v43 = vadd.f32 %v37, 0.0
  %v44 = vadd.f32 %v42, %v43
  %45 = vst [vmem:[%s3] sm:$0xff] %v44
  %v46 = vadd.f32 %v40, 0.0
  %v47 = vadd.f32 %v41, 0.0
  %v48 = vadd.f32 %v46, %v47
  %49 = vst [vmem:[%s4] sm:$0xff] %v48
  // Predicated region
  $region14: #{masked_l1_loss.1} parent=0 // pred_check
    _
  $region15: #{masked_l1_loss.1} parent=0 // pred_check_branch
    %51 = sbr.rel (0) target = $region17
  $region16: #{masked_l1_loss.1} parent=0 // pred_region
    _
  $region17: #{masked_l1_loss.1} parent=0 // pred_fallthru
    _
  // Predicated region
  $region18: #{masked_l1_loss.1} parent=0 // pred_check
    _
  $region19: #{masked_l1_loss.1} parent=0 // pred_check_branch
    %53 = sbr.rel (0) target = $region21
  $region20: #{masked_l1_loss.1} parent=0 // pred_region
    _
  $region21: #{masked_l1_loss.1} parent=0 // pred_fallthru
    _
  // Predicated region
  $region22: #{masked_l1_loss.1} parent=0 // pred_check
    _
  $region23: #{masked_l1_loss.1} parent=0 // pred_check_branch
    %55 = sbr.rel (0) target = $region25
  $region24: #{masked_l1_loss.1} parent=0 // pred_region
    _
  $region25: #{masked_l1_loss.1} parent=0 // pred_fallthru
    _
  // Predicated region
  $region26: #{masked_l1_loss.1} parent=0 // pred_check
    _
  $region27: #{masked_l1_loss.1} parent=0 // pred_check_branch
    %57 = sbr.rel (0) target = $region29
  $region28: #{masked_l1_loss.1} parent=0 // pred_region
    _
  $region29: #{masked_l1_loss.1} parent=0 // pred_fallthru
    _

</llo_original>
